<compile_context>
chip_gen: v6e
topology: v6e:2x2x1
jax: 0.10.0
libtpu: 0.0.40
codegen_flags: <defaults>
</compile_context>

<pallas_src>
import math
from functools import partial

import jax
import jax.numpy as jnp
import numpy as np
from jax import lax
from jax.experimental import pallas as pl
from jax.experimental.pallas import tpu as pltpu


# ----------------------------- Pallas kernel --------------------------------
def _gridcell_kernel(coords_ref, fx_ref, fy_ref, phase_ref, w_ref, b_ref,
                     eye_ref, o_ref):
    # coords_ref : (2, TM)      f32  row 0 = x, row 1 = y (lane-dense)
    # fx_ref     : (D_in, 1)    f32  freq for columns of coord dim 0, else 0
    # fy_ref     : (D_in, 1)    f32  freq for columns of coord dim 1, else 0
    # phase_ref  : (D_in, 1)    f32  0 for sin columns, pi/2 for cos columns
    # w_ref      : (E, D_in)    f32  FFN weight, transposed
    # b_ref      : (E, 1)       f32  FFN bias (column)
    # eye_ref    : (E, E)       f32  identity (MXU transpose of the result)
    # o_ref      : (TM, E)      f32  output tile, row-major (M, E) layout
    c = coords_ref[...]                       # (2, TM)
    cx = c[0:1, :]                            # (1, TM)
    cy = c[1:2, :]                            # (1, TM)

    # VPU: angles[j, m] = fx[j]*x[m] + fy[j]*y[m] + phase[j]   (lane-dense)
    angles = fx_ref[...] * cx + fy_ref[...] * cy + phase_ref[...]   # (D_in, TM)

    # Single EUP pass: cos folded into sin via the +pi/2 phase column.
    emb = jnp.sin(angles)                                           # (D_in, TM)

    # MXU FFN + bias + tanh, all in the lane-dense (E, TM) orientation.
    act = jnp.tanh(
        jnp.dot(w_ref[...], emb, preferred_element_type=jnp.float32)
        + b_ref[...])                                               # (E, TM)

    # MXU transpose (exact): o[m, e] = sum_j act[j, m] * I[j, e] = act[e, m].
    # Writes the tile straight in (M, E) layout -> no XLA transpose pass.
    o_ref[...] = lax.dot_general(
        act, eye_ref[...],
        dimension_numbers=(((0,), (0,)), ((), ())),
        preferred_element_type=jnp.float32)                         # (TM, E)


# ------------------------------ tiling policy --------------------------------
def _round_up(x, m):
    return ((x + m - 1) // m) * m


_TM_MAX = 8192   # lane-tile cap: ~19 MiB VMEM/step incl. double buffers + temps
_TM_MIN = 1024   # floor so per-step (~0.35us) pipeline overhead stays amortized


def _pick_tile_m(M):
    """Points (lanes) per grid step."""
    if M <= _TM_MAX:
        # Single exact block: no padding, no partial blocks.  At these sizes
        # the call is fixed-overhead dominated; megacore sharding buys nothing.
        return M
    # Large M: aim for >= 8 grid steps so the 'parallel' axis can be sharded
    # across both TensorCores on v7x, but keep each step big enough to amortize
    # per-step overhead and small enough to stay well inside VMEM.
    tm = _round_up(pl.cdiv(M, 8), 128)
    return max(_TM_MIN, min(tm, _TM_MAX))


# --------------------------------- wrapper -----------------------------------
@partial(jax.jit, static_argnames=("tile_m",))
def gridcell_encoder_forward(coords, fx, fy, phase, w, b, *, tile_m=None):
    """coords: (B, N, 2) f32 -> (B, N, spa_embed_dim) f32."""
    B, N, coord_dim = coords.shape
    assert coord_dim == 2
    M = B * N
    D_in, E = w.shape

    # Lane-dense coords: (2, M), row-major along M.
    coords_t = coords.reshape(M, coord_dim).astype(jnp.float32).T   # (2, M)

    TM = _pick_tile_m(M) if tile_m is None else int(tile_m)
    n_tiles = pl.cdiv(M, TM)
    M_pad = n_tiles * TM
    if M_pad != M:
        # Cheap: only the tiny (2, M) input is padded.  The output stays at its
        # exact (M, E) shape; Pallas masks the final partial output block.
        coords_t = jnp.pad(coords_t, ((0, 0), (0, M_pad - M)))

    w_t = w.T.astype(jnp.float32)                 # (E, D_in)
    b_col = b.reshape(E, 1).astype(jnp.float32)   # (E, 1)
    eye_e = jnp.eye(E, dtype=jnp.float32)         # (E, E)

    out = pl.pallas_call(
        _gridcell_kernel,
        out_shape=jax.ShapeDtypeStruct((M, E), jnp.float32),
        grid=(n_tiles,),
        in_specs=[
            pl.BlockSpec((2, TM), lambda i: (0, i)),      # coords tile (pipelined)
            pl.BlockSpec((D_in, 1), lambda i: (0, 0)),    # fx     (VMEM-resident)
            pl.BlockSpec((D_in, 1), lambda i: (0, 0)),    # fy
            pl.BlockSpec((D_in, 1), lambda i: (0, 0)),    # phase
            pl.BlockSpec((E, D_in), lambda i: (0, 0)),    # W^T
            pl.BlockSpec((E, 1), lambda i: (0, 0)),       # bias
            pl.BlockSpec((E, E), lambda i: (0, 0)),       # identity
        ],
        out_specs=pl.BlockSpec((TM, E), lambda i: (i, 0)),
        compiler_params=pltpu.CompilerParams(
            dimension_semantics=("parallel",),            # megacore sharding (v7x)
            vmem_limit_bytes=40 * 1024 * 1024,
        ),
    )(coords_t, fx, fy, phase, w_t, b_col, eye_e)

    # Free reshape: output already in (M, E) row-major layout.
    return out.reshape(B, N, E)


# ------------------------- parameter / constant setup ------------------------
def make_encoder_params(spa_embed_dim=32, coord_dim=2, frequency_num=16,
                        max_radius=10000.0, min_radius=10.0, seed=0):
    assert coord_dim == 2
    # geometric frequency list (same as _cal_freq_list(freq_init='geometric'))
    log_inc = math.log(float(max_radius) / float(min_radius)) / frequency_num
    timescales = min_radius * np.exp(np.arange(frequency_num).astype(np.float64) * log_inc)
    freq_list = (1.0 / timescales).astype(np.float32)                 # (F,)

    D_in = coord_dim * frequency_num * 2                              # 2 * F * 2

    # Column layout j = d*F*2 + f*2 + k matches the PyTorch reshape of the
    # (B, N, coord_dim, F, 2) tensor in make_input_embeds.
    fx = np.zeros((D_in, 1), dtype=np.float32)
    fy = np.zeros((D_in, 1), dtype=np.float32)
    phase = np.zeros((D_in, 1), dtype=np.float32)
    for d in range(coord_dim):
        for f in range(frequency_num):
            for k in range(2):
                j = d * frequency_num * 2 + f * 2 + k
                if d == 0:
                    fx[j, 0] = freq_list[f]
                else:
                    fy[j, 0] = freq_list[f]
                phase[j, 0] = 0.0 if k == 0 else (np.pi / 2.0)        # cos = sin(x + pi/2)

    # FFN = MultiLayerFeedForwardNN(D_in, spa_embed_dim, num_hidden_layers=0,
    #                               activation='tanh', dropout_rate=None)
    #     = tanh(Linear(D_in, spa_embed_dim))
    key = jax.random.PRNGKey(seed)
    kw, kb = jax.random.split(key)
    xav = math.sqrt(6.0 / (D_in + spa_embed_dim))                     # xavier_uniform_
    w = jax.random.uniform(kw, (D_in, spa_embed_dim), jnp.float32, -xav, xav)
    bb = 1.0 / math.sqrt(D_in)                                        # default nn.Linear bias init
    b = jax.random.uniform(kb, (spa_embed_dim,), jnp.float32, -bb, bb)

    return jnp.asarray(freq_list), jnp.asarray(fx), jnp.asarray(fy), jnp.asarray(phase), w, b


# --------------------------- pure-JAX reference ------------------------------
def reference_forward(coords, freq_list, w, b, coord_dim, frequency_num):
    B, N, _ = coords.shape
    c = coords[..., None, None]                                       # (B,N,cd,1,1)
    c = jnp.broadcast_to(c, (B, N, coord_dim, frequency_num, 2))
    freq_mat = jnp.repeat(freq_list[:, None], 2, axis=1)              # (F,2)
    ang = c * freq_mat
    emb = jnp.stack([jnp.sin(ang[..., 0]), jnp.cos(ang[..., 1])], axis=-1)
    emb = emb.reshape(B, N, coord_dim * frequency_num * 2)
    return jnp.tanh(emb @ w + b)


# ----------------------------------- main ------------------------------------
if __name__ == "__main__":
    coord_dim, frequency_num = 2, 16
    spa_embed_dim = 32
    max_radius, min_radius = 10000.0, 10.0

    freq_list, fx, fy, phase, w, b = make_encoder_params(
        spa_embed_dim, coord_dim, frequency_num, max_radius, min_radius, seed=0)

    def run_check(B, N, key, **kw):
        coords = jax.random.uniform(key, (B, N, coord_dim), jnp.float32,
                                    minval=-100.0, maxval=100.0)
        out = jax.block_until_ready(
            gridcell_encoder_forward(coords, fx, fy, phase, w, b, **kw))
        assert out.shape == (B, N, spa_embed_dim)
        ref = reference_forward(coords, freq_list, w, b, coord_dim, frequency_num)
        np.testing.assert_allclose(np.asarray(out), np.asarray(ref),
                                   rtol=1e-4, atol=1e-4)

    key = jax.random.PRNGKey(0)
    k1, k2, k3 = jax.random.split(key, 3)

    # primary small example (B=2, N=8): single exact tile, no padding
    run_check(2, 8, k1)
    # multi-tile path with a ragged (masked) final output block
    run_check(2, 700, k2, tile_m=512)
    # large-M default path: TM=1152, 8 'parallel' grid steps, ragged tail
    run_check(2, 4601, k3)

    print("KERNEL_OK")
</pallas_src>

<mosaic_0001>
module attributes {stable_mosaic.version = 11 : i64} {
  func.func @_gridcell_kernel(%arg0: i32, %arg1: memref<2x16xf32, #tpu.memory_space<vmem>>, %arg2: memref<64x1xf32, #tpu.memory_space<vmem>>, %arg3: memref<64x1xf32, #tpu.memory_space<vmem>>, %arg4: memref<64x1xf32, #tpu.memory_space<vmem>>, %arg5: memref<32x64xf32, #tpu.memory_space<vmem>>, %arg6: memref<32x1xf32, #tpu.memory_space<vmem>>, %arg7: memref<32x32xf32, #tpu.memory_space<vmem>>, %arg8: memref<16x32xf32, #tpu.memory_space<vmem>>) attributes {dimension_semantics = [#tpu.dimension_semantics<parallel>], iteration_bounds = array<i64: 1>, scalar_prefetch = 0 : i64, scratch_operands = 0 : i64, tpu.core_type = #tpu.core_type<tc>, window_params = [{transform_indices = @transform_0, window_bounds = array<i64: 2, 16>}, {pipeline_mode = #tpu.pipeline_mode<synchronous>, transform_indices = @transform_1, window_bounds = array<i64: 64, 1>}, {pipeline_mode = #tpu.pipeline_mode<synchronous>, transform_indices = @transform_2, window_bounds = array<i64: 64, 1>}, {pipeline_mode = #tpu.pipeline_mode<synchronous>, transform_indices = @transform_3, window_bounds = array<i64: 64, 1>}, {pipeline_mode = #tpu.pipeline_mode<synchronous>, transform_indices = @transform_4, window_bounds = array<i64: 32, 64>}, {pipeline_mode = #tpu.pipeline_mode<synchronous>, transform_indices = @transform_5, window_bounds = array<i64: 32, 1>}, {pipeline_mode = #tpu.pipeline_mode<synchronous>, transform_indices = @transform_6, window_bounds = array<i64: 32, 32>}, {transform_indices = @transform_7, window_bounds = array<i64: 16, 32>}]} {
    %c0 = arith.constant 0 : index
    %c0_0 = arith.constant 0 : index
    %0 = vector.load %arg1[%c0, %c0_0] : memref<2x16xf32, #tpu.memory_space<vmem>>, vector<2x16xf32>
    %1 = vector.extract_strided_slice %0 {offsets = [0, 0], sizes = [1, 16], strides = [1, 1]} : vector<2x16xf32> to vector<1x16xf32>
    %2 = vector.extract_strided_slice %0 {offsets = [1, 0], sizes = [1, 16], strides = [1, 1]} : vector<2x16xf32> to vector<1x16xf32>
    %c0_1 = arith.constant 0 : index
    %c0_2 = arith.constant 0 : index
    %3 = vector.load %arg2[%c0_1, %c0_2] : memref<64x1xf32, #tpu.memory_space<vmem>>, vector<64x1xf32>
    %4 = vector.broadcast %3 : vector<64x1xf32> to vector<64x16xf32>
    %5 = vector.broadcast %1 : vector<1x16xf32> to vector<64x16xf32>
    %6 = arith.mulf %4, %5 : vector<64x16xf32>
    %c0_3 = arith.constant 0 : index
    %c0_4 = arith.constant 0 : index
    %7 = vector.load %arg3[%c0_3, %c0_4] : memref<64x1xf32, #tpu.memory_space<vmem>>, vector<64x1xf32>
    %8 = vector.broadcast %7 : vector<64x1xf32> to vector<64x16xf32>
    %9 = vector.broadcast %2 : vector<1x16xf32> to vector<64x16xf32>
    %10 = arith.mulf %8, %9 : vector<64x16xf32>
    %11 = arith.addf %6, %10 : vector<64x16xf32>
    %c0_5 = arith.constant 0 : index
    %c0_6 = arith.constant 0 : index
    %12 = vector.load %arg4[%c0_5, %c0_6] : memref<64x1xf32, #tpu.memory_space<vmem>>, vector<64x1xf32>
    %13 = vector.broadcast %12 : vector<64x1xf32> to vector<64x16xf32>
    %14 = arith.addf %11, %13 : vector<64x16xf32>
    %15 = math.sin %14 : vector<64x16xf32>
    %c0_7 = arith.constant 0 : index
    %c0_8 = arith.constant 0 : index
    %16 = vector.load %arg5[%c0_7, %c0_8] : memref<32x64xf32, #tpu.memory_space<vmem>>, vector<32x64xf32>
    %cst = arith.constant dense<0.000000e+00> : vector<32x16xf32>
    %17 = tpu.matmul %16, %15, %cst {dimension_numbers = #tpu.dot_dimension_numbers<[1], [0], [0], [1], [0, 0, 1, 1], [], []>} : vector<32x64xf32>, vector<64x16xf32>, vector<32x16xf32> -> vector<32x16xf32>
    %c0_9 = arith.constant 0 : index
    %c0_10 = arith.constant 0 : index
    %18 = vector.load %arg6[%c0_9, %c0_10] : memref<32x1xf32, #tpu.memory_space<vmem>>, vector<32x1xf32>
    %19 = vector.broadcast %18 : vector<32x1xf32> to vector<32x16xf32>
    %20 = arith.addf %17, %19 : vector<32x16xf32>
    %21 = math.tanh %20 : vector<32x16xf32>
    %c0_11 = arith.constant 0 : index
    %c0_12 = arith.constant 0 : index
    %22 = vector.load %arg7[%c0_11, %c0_12] : memref<32x32xf32, #tpu.memory_space<vmem>>, vector<32x32xf32>
    %cst_13 = arith.constant dense<0.000000e+00> : vector<16x32xf32>
    %23 = tpu.matmul %21, %22, %cst_13 {dimension_numbers = #tpu.dot_dimension_numbers<[0], [0], [1], [1], [0, 1, 1, 1], [], []>} : vector<32x16xf32>, vector<32x32xf32>, vector<16x32xf32> -> vector<16x32xf32>
    %c0_14 = arith.constant 0 : index
    %c0_15 = arith.constant 0 : index
    %24 = vector.load %arg8[%c0_14, %c0_15] : memref<16x32xf32, #tpu.memory_space<vmem>>, vector<16x32xf32>
    tpu.vector_store %arg8[%c0_14, %c0_15], %23 {strides = array<i32>} : memref<16x32xf32, #tpu.memory_space<vmem>>, vector<16x32xf32>,
    return
  }
  func.func @transform_0(%arg0: i32) -> (i32, i32) {
    %c0_i32 = arith.constant 0 : i32
    %c0_i32_0 = arith.constant 0 : i32
    return %c0_i32, %arg0 : i32, i32
  }
  func.func @transform_1(%arg0: i32) -> (i32, i32) {
    %c0_i32 = arith.constant 0 : i32
    %c0_i32_0 = arith.constant 0 : i32
    %c0_i32_1 = arith.constant 0 : i32
    return %c0_i32, %c0_i32_0 : i32, i32
  }
  func.func @transform_2(%arg0: i32) -> (i32, i32) {
    %c0_i32 = arith.constant 0 : i32
    %c0_i32_0 = arith.constant 0 : i32
    %c0_i32_1 = arith.constant 0 : i32
    return %c0_i32, %c0_i32_0 : i32, i32
  }
  func.func @transform_3(%arg0: i32) -> (i32, i32) {
    %c0_i32 = arith.constant 0 : i32
    %c0_i32_0 = arith.constant 0 : i32
    %c0_i32_1 = arith.constant 0 : i32
    return %c0_i32, %c0_i32_0 : i32, i32
  }
  func.func @transform_4(%arg0: i32) -> (i32, i32) {
    %c0_i32 = arith.constant 0 : i32
    %c0_i32_0 = arith.constant 0 : i32
    %c0_i32_1 = arith.constant 0 : i32
    return %c0_i32, %c0_i32_0 : i32, i32
  }
  func.func @transform_5(%arg0: i32) -> (i32, i32) {
    %c0_i32 = arith.constant 0 : i32
    %c0_i32_0 = arith.constant 0 : i32
    %c0_i32_1 = arith.constant 0 : i32
    return %c0_i32, %c0_i32_0 : i32, i32
  }
  func.func @transform_6(%arg0: i32) -> (i32, i32) {
    %c0_i32 = arith.constant 0 : i32
    %c0_i32_0 = arith.constant 0 : i32
    %c0_i32_1 = arith.constant 0 : i32
    return %c0_i32, %c0_i32_0 : i32, i32
  }
  func.func @transform_7(%arg0: i32) -> (i32, i32) {
    %c0_i32 = arith.constant 0 : i32
    %c0_i32_0 = arith.constant 0 : i32
    return %arg0, %c0_i32 : i32, i32
  }
}

</mosaic_0001>

<llo_original>
// kernel: gridcell_encoder_forward.1
$region0: #{gridcell_encoder_forward.1}
  #allocation0 [shape = 'u32[]', space=smem, size = 0x4, offset = 0x4, fixed_abs, tag = 'smem constant byte address 0x4 - core index']
  #allocation1 [shape = 'u32[144,128]{1,0:T(1,128)}', space=vmem, size = 0x12000, scoped, tag = 'internal scratch']
  %s0 = inlined_call_operand.vmem [shape: f32[2,16], index: 0, kind: input, shape index: {}]
  %s1 = inlined_call_operand.vmem [shape: f32[64,1], index: 1, kind: input, shape index: {}]
  %s2 = inlined_call_operand.vmem [shape: f32[64,1], index: 2, kind: input, shape index: {}]
  %s3 = inlined_call_operand.vmem [shape: f32[64,1], index: 3, kind: input, shape index: {}]
  %s4 = inlined_call_operand.vmem [shape: f32[32,64], index: 4, kind: input, shape index: {}]
  %s5 = inlined_call_operand.vmem [shape: f32[32,1], index: 5, kind: input, shape index: {}]
  %s6 = inlined_call_operand.vmem [shape: f32[32,32], index: 6, kind: input, shape index: {}]
  %s7 = inlined_call_operand.hbm [shape: f32[16,32], index: 7, kind: output, shape index: {}]
  %s8 = sld [smem:[#allocation0]]
  $region38: #{gridcell_encoder_forward.1} parent=0
    _
  %s10 = ssub.s32 1, %s8
  %s11 = scalar_select 0, %s10, %s8
  $region1: #{gridcell_encoder_forward.1} parent=0
    #allocation2 [shape = 'u8[8192]{0}', space=vmem, size = 0x2000, scoped, tag = 'output window, operand 0, single buffered']
    #allocation3 [shape = 's32[1]{0}', space=sflag, size = 0x4, scoped, tag = 'scoped memory for gridcell_encoder_forward.1']
    %12 = vsyncpa [#allocation3], 0
    // Predicated region
    $region2: #{gridcell_encoder_forward.1} parent=1 // pred_check
      _
    $region3: #{gridcell_encoder_forward.1} parent=1 // pred_check_branch
      %14 = sbr.rel (0) target = $region5
    $region4: #{gridcell_encoder_forward.1} parent=1 // pred_region
      _
    $region5: #{gridcell_encoder_forward.1} parent=1 // pred_fallthru
      _
    // Predicated region
    $region6: #{gridcell_encoder_forward.1} parent=1 // pred_check
      _
    $region7: #{gridcell_encoder_forward.1} parent=1 // pred_check_branch
      %16 = sbr.rel (0) target = $region9
    $region8: #{gridcell_encoder_forward.1} parent=1 // pred_region
      _
    $region9: #{gridcell_encoder_forward.1} parent=1 // pred_fallthru
      _
    // Predicated region
    $region10: #{gridcell_encoder_forward.1} parent=1 // pred_check
      _
    $region11: #{gridcell_encoder_forward.1} parent=1 // pred_check_branch
      %18 = sbr.rel (0) target = $region13
    $region12: #{gridcell_encoder_forward.1} parent=1 // pred_region
      _
    $region13: #{gridcell_encoder_forward.1} parent=1 // pred_fallthru
      _
    // Predicated region
    $region14: #{gridcell_encoder_forward.1} parent=1 // pred_check
      _
    $region15: #{gridcell_encoder_forward.1} parent=1 // pred_check_branch
      %20 = sbr.rel (0) target = $region17
    $region16: #{gridcell_encoder_forward.1} parent=1 // pred_region
      _
    $region17: #{gridcell_encoder_forward.1} parent=1 // pred_fallthru
      _
    // Predicated region
    $region18: #{gridcell_encoder_forward.1} parent=1 // pred_check
      _
    $region19: #{gridcell_encoder_forward.1} parent=1 // pred_check_branch
      %22 = sbr.rel (0) target = $region21
    $region20: #{gridcell_encoder_forward.1} parent=1 // pred_region
      _
    $region21: #{gridcell_encoder_forward.1} parent=1 // pred_fallthru
      _
    // Predicated region
    $region22: #{gridcell_encoder_forward.1} parent=1 // pred_check
      _
    $region23: #{gridcell_encoder_forward.1} parent=1 // pred_check_branch
      %24 = sbr.rel (0) target = $region25
    $region24: #{gridcell_encoder_forward.1} parent=1 // pred_region
      _
    $region25: #{gridcell_encoder_forward.1} parent=1 // pred_fallthru
      _
    // Predicated region
    $region26: #{gridcell_encoder_forward.1} parent=1 // pred_check
      _
    $region27: #{gridcell_encoder_forward.1} parent=1 // pred_check_branch
      %26 = sbr.rel (0) target = $region29
    $region28: #{gridcell_encoder_forward.1} parent=1 // pred_region
      _
    $region29: #{gridcell_encoder_forward.1} parent=1 // pred_fallthru
      _
    %v27 = vld [vmem:[%s0] sm:$0x3]
    %v28 = vld [vmem:[%s1] sm:$0xff]
    %v29 = vld [vmem:[%s1 + $0x8] sm:$0xff]
    %v30 = vld [vmem:[%s1 + $0x10] sm:$0xff]
    %v31 = vld [vmem:[%s1 + $0x18] sm:$0xff]
    %v32 = vld [vmem:[%s1 + $0x20] sm:$0xff]
    %v33 = vld [vmem:[%s1 + $0x28] sm:$0xff]
    %v34 = vld [vmem:[%s1 + $0x30] sm:$0xff]
    %v35 = vld [vmem:[%s1 + $0x38] sm:$0xff]
    %37 = vset.pattern.permute.xlu0 0
    %38 = vperm.xlu0 %37, %v28
    %v39 = vpop.permute.xlu0 %38
    %42 = vset.pattern.permute.xlu0 0
    %43 = vperm.xlu0 %42, %v29
    %v44 = vpop.permute.xlu0 %43
    %47 = vset.pattern.permute.xlu0 0
    %48 = vperm.xlu0 %47, %v30
    %v49 = vpop.permute.xlu0 %48
    %52 = vset.pattern.permute.xlu0 0
    %53 = vperm.xlu0 %52, %v31
    %v54 = vpop.permute.xlu0 %53
    %57 = vset.pattern.permute.xlu0 0
    %58 = vperm.xlu0 %57, %v32
    %v59 = vpop.permute.xlu0 %58
    %62 = vset.pattern.permute.xlu0 0
    %63 = vperm.xlu0 %62, %v33
    %v64 = vpop.permute.xlu0 %63
    %67 = vset.pattern.permute.xlu0 0
    %68 = vperm.xlu0 %67, %v34
    %v69 = vpop.permute.xlu0 %68
    %72 = vset.pattern.permute.xlu0 0
    %73 = vperm.xlu0 %72, %v35
    %v74 = vpop.permute.xlu0 %73
    %v76 = vlaneseq
    %v77 = vshrl.u32 %v76, 7
    %v78 = vsub.s32 0, %v77
    %v79 = vrot.slane %v27, %v78
    %v80 = vmul.f32 %v39, %v79
    %v81 = vmul.f32 %v44, %v79
    %v82 = vmul.f32 %v49, %v79
    %v83 = vmul.f32 %v54, %v79
    %v84 = vmul.f32 %v59, %v79
    %v85 = vmul.f32 %v64, %v79
    %v86 = vmul.f32 %v69, %v79
    %v87 = vmul.f32 %v74, %v79
    %v88 = vld [vmem:[%s2] sm:$0xff]
    %v89 = vld [vmem:[%s2 + $0x8] sm:$0xff]
    %v90 = vld [vmem:[%s2 + $0x10] sm:$0xff]
    %v91 = vld [vmem:[%s2 + $0x18] sm:$0xff]
    %v92 = vld [vmem:[%s2 + $0x20] sm:$0xff]
    %v93 = vld [vmem:[%s2 + $0x28] sm:$0xff]
    %v94 = vld [vmem:[%s2 + $0x30] sm:$0xff]
    %v95 = vld [vmem:[%s2 + $0x38] sm:$0xff]
    %97 = vset.pattern.permute.xlu0 0
    %98 = vperm.xlu0 %97, %v88
    %v99 = vpop.permute.xlu0 %98
    %102 = vset.pattern.permute.xlu0 0
    %103 = vperm.xlu0 %102, %v89
    %v104 = vpop.permute.xlu0 %103
    %107 = vset.pattern.permute.xlu0 0
    %108 = vperm.xlu0 %107, %v90
    %v109 = vpop.permute.xlu0 %108
    %112 = vset.pattern.permute.xlu0 0
    %113 = vperm.xlu0 %112, %v91
    %v114 = vpop.permute.xlu0 %113
    %117 = vset.pattern.permute.xlu0 0
    %118 = vperm.xlu0 %117, %v92
    %v119 = vpop.permute.xlu0 %118
    %122 = vset.pattern.permute.xlu0 0
    %123 = vperm.xlu0 %122, %v93
    %v124 = vpop.permute.xlu0 %123
    %127 = vset.pattern.permute.xlu0 0
    %128 = vperm.xlu0 %127, %v94
    %v129 = vpop.permute.xlu0 %128
    %132 = vset.pattern.permute.xlu0 0
    %133 = vperm.xlu0 %132, %v95
    %v134 = vpop.permute.xlu0 %133
    %v136 = vlaneseq
    %v137 = vshrl.u32 %v136, 7
    %v138 = vsub.s32 1, %v137
    %v139 = vrot.slane %v27, %v138
    %v140 = vmul.f32 %v99, %v139
    %v141 = vmul.f32 %v104, %v139
    %v142 = vmul.f32 %v109, %v139
    %v143 = vmul.f32 %v114, %v139
    %v144 = vmul.f32 %v119, %v139
    %v145 = vmul.f32 %v124, %v139
    %v146 = vmul.f32 %v129, %v139
    %v147 = vmul.f32 %v134, %v139
    %v148 = vadd.f32 %v80, %v140
    %v149 = vadd.f32 %v81, %v141
    %v150 = vadd.f32 %v82, %v142
    %v151 = vadd.f32 %v83, %v143
    %v152 = vadd.f32 %v84, %v144
    %v153 = vadd.f32 %v85, %v145
    %v154 = vadd.f32 %v86, %v146
    %v155 = vadd.f32 %v87, %v147
    %v156 = vld [vmem:[%s3] sm:$0xff]
    %v157 = vld [vmem:[%s3 + $0x8] sm:$0xff]
    %v158 = vld [vmem:[%s3 + $0x10] sm:$0xff]
    %v159 = vld [vmem:[%s3 + $0x18] sm:$0xff]
    %v160 = vld [vmem:[%s3 + $0x20] sm:$0xff]
    %v161 = vld [vmem:[%s3 + $0x28] sm:$0xff]
    %v162 = vld [vmem:[%s3 + $0x30] sm:$0xff]
    %v163 = vld [vmem:[%s3 + $0x38] sm:$0xff]
    %165 = vset.pattern.permute.xlu0 0
    %166 = vperm.xlu0 %165, %v156
    %v167 = vpop.permute.xlu0 %166
    %170 = vset.pattern.permute.xlu0 0
    %171 = vperm.xlu0 %170, %v157
    %v172 = vpop.permute.xlu0 %171
    %175 = vset.pattern.permute.xlu0 0
    %176 = vperm.xlu0 %175, %v158
    %v177 = vpop.permute.xlu0 %176
    %180 = vset.pattern.permute.xlu0 0
    %181 = vperm.xlu0 %180, %v159
    %v182 = vpop.permute.xlu0 %181
    %185 = vset.pattern.permute.xlu0 0
    %186 = vperm.xlu0 %185, %v160
    %v187 = vpop.permute.xlu0 %186
    %190 = vset.pattern.permute.xlu0 0
    %191 = vperm.xlu0 %190, %v161
    %v192 = vpop.permute.xlu0 %191
    %195 = vset.pattern.permute.xlu0 0
    %196 = vperm.xlu0 %195, %v162
    %v197 = vpop.permute.xlu0 %196
    %200 = vset.pattern.permute.xlu0 0
    %201 = vperm.xlu0 %200, %v163
    %v202 = vpop.permute.xlu0 %201
    %v204 = vadd.f32 %v148, %v167
    %v205 = vadd.f32 %v149, %v172
    %v206 = vadd.f32 %v150, %v177
    %v207 = vadd.f32 %v151, %v182
    %v208 = vadd.f32 %v152, %v187
    %v209 = vadd.f32 %v153, %v192
    %v210 = vadd.f32 %v154, %v197
    %v211 = vadd.f32 %v155, %v202
    %v212 = vand.u32 2147483647, %v204
    %vm213 = vcmp.le.f32.partialorder %v212, 0.7853982
    %vm214 = vcmp.lt.s32.totalorder %v204, 0
    %v215 = vand.u32 %v204, 2139095040
    %v216 = vshrl.u32 %v215, 23
    %v217 = vsub.s32 %v216, 127
    %v218 = vand.u32 2147483647, %v204
    %v219 = vand.u32 %v218, 8388607
    %v220 = vor.u32 %v219, 8388608
    %v221 = vsub.s32 0, %v220
    %v222 = vadd.s32 %v217, 1
    %vm223 = vcmp.gt.s32.totalorder %v222, 0
    %v224 = vsel %vm223, %v222, 0
    %v225 = vshrl.u32 %v224, 5
    %v226 = vand.u32 %v224, 31
    %v227 = vsub.s32 32, %v226
    %v228 = vshrl.u32 683565275, %v227
    %v229 = vshll.u32 683565275, %v226
    %v230 = vshrl.u32 2475754826, %v227
    %v231 = vor.u32 %v229, %v230
    %v232 = vshll.u32 2475754826, %v226
    %v233 = vshrl.u32 2131351028, %v227
    %v234 = vor.u32 %v232, %v233
    %v235 = vshll.u32 2131351028, %v226
    %v236 = vshrl.u32 2102212464, %v227
    %v237 = vor.u32 %v235, %v236
    %v238 = vshll.u32 2102212464, %v226
    %v239 = vshrl.u32 920167782, %v227
    %v240 = vor.u32 %v238, %v239
    %v241 = vshll.u32 920167782, %v226
    %v242 = vshrl.u32 1326507024, %v227
    %v243 = vor.u32 %v241, %v242
    %vm244 = vcmp.lt.s32.totalorder %v225, 1
    %vm245 = vcmp.lt.s32.totalorder %v225, 2
    %vm246 = vcmp.lt.s32.totalorder %v225, 3
    %vm247 = vcmp.lt.s32.totalorder %v225, 4
    %v248 = vsel %vm244, %v228, %v231
    %v249 = vsel %vm247, %v237, 2102212464
    %v250 = vsel %vm246, %v234, %v249
    %v251 = vsel %vm245, %v248, %v250
    %v252 = vsel %vm244, %v231, %v234
    %v253 = vsel %vm247, %v240, 920167782
    %v254 = vsel %vm246, %v237, %v253
    %v255 = vsel %vm245, %v252, %v254
    %v256 = vsel %vm244, %v234, %v237
    %v257 = vsel %vm247, %v243, 1326507024
    %v258 = vsel %vm246, %v240, %v257
    %v259 = vsel %vm245, %v256, %v258
    %v260 = vshll.u32 %v220, 8
    %v261 = vmul.u32.u64.compose %v260, %v259
    %v262 = vextract.low.u32 %v261
    %v263 = vextract.high.u32 %v261
    %v264 = vmul.u32.u64.compose %v260, %v255
    %v265 = vextract.low.u32 %v264
    %v266 = vextract.high.u32 %v264
    %v267 = vmul.u32 %v260, %v251
    %v268 = vadd.s32 %v263, %v265
    %vm269 = vc.u32 %v263, %v265
    %v270 = vadd.s32 %v266, 1
    %v271 = vsel %vm269, %v270, %v266
    %v272 = vadd.s32 %v267, %v271
    %v273 = vadd.s32 %v272, 536870912
    %v274 = vshrl.u32 %v273, 30
    %v275 = vshll.u32 %v274, 30
    %v276 = vsub.s32 %v272, %v275
    %vm277 = vcmp.lt.s32.totalorder %v276, 0
    %v278 = vsub.s32 0, %v276
    %v279 = vsel %vm277, %v278, %v276
    %v280 = vclz %v279
    %v281 = vsub.s32 %v280, 2
    %vm282 = vcmp.gt.s32.totalorder 0, %v281
    %v283 = vsel %vm282, 0, %v281
    %v284 = vsub.s32 32, %v283
    %v285 = vshll.u32 %v276, %v283
    %v286 = vshrl.u32 %v268, %v284
    %v287 = vor.u32 %v285, %v286
    %v288 = vsub.s32 4294967266, %v283
    %v289 = vadd.s32 %v288, 127
    %v290 = vshll.u32 %v289, 23
    %v291 = vor.u32 4788187, %v290
    %v292 = vand.u32 2147483647, %v291
    %v294 = vcvt.s32.f32 %v287
    %v295 = vmul.f32 %v294, %v292
    %v296 = vxor.u32 %v295, 2147483648
    %v297 = vsel %vm214, %v296, %v295
    %v298 = vsub.s32 4, %v274
    %v299 = vsel %vm214, %v298, %v274
    %v300 = vsel %vm213, %v204, %v297
    %v301 = vsel %vm213, 0, %v299
    %v302 = vcosq.f32.pop %v300
    %v303 = vsinq.f32.pop %v300
    %vm304 = vweird.f32 %v204
    %v305 = vadd.s32 %v301, 3
    %v306 = vand.u32 %v305, 3
    %vm307 = vcmp.lt.s32.totalorder %v306, 2
    %vm308 = vcmp.eq.s32.totalorder %v306, 0
    %v309 = vxor.u32 %v303, 2147483648
    %v310 = vsel %vm308, %v302, %v309
    %vm311 = vcmp.eq.s32.totalorder %v306, 2
    %v312 = vxor.u32 %v302, 2147483648
    %v313 = vsel %vm311, %v312, %v303
    %v314 = vsel %vm307, %v310, %v313
    %v315 = vsel %vm304, nan, %v314
    %v316 = vand.u32 2147483647, %v205
    %vm317 = vcmp.le.f32.partialorder %v316, 0.7853982
    %vm318 = vcmp.lt.s32.totalorder %v205, 0
    %v319 = vand.u32 %v205, 2139095040
    %v320 = vshrl.u32 %v319, 23
    %v321 = vsub.s32 %v320, 127
    %v322 = vand.u32 2147483647, %v205
    %v323 = vand.u32 %v322, 8388607
    %v324 = vor.u32 %v323, 8388608
    %v325 = vsub.s32 0, %v324
    %v326 = vadd.s32 %v321, 1
    %vm327 = vcmp.gt.s32.totalorder %v326, 0
    %v328 = vsel %vm327, %v326, 0
    %v329 = vshrl.u32 %v328, 5
    %v330 = vand.u32 %v328, 31
    %v331 = vsub.s32 32, %v330
    %v332 = vshrl.u32 683565275, %v331
    %v333 = vshll.u32 683565275, %v330
    %v334 = vshrl.u32 2475754826, %v331
    %v335 = vor.u32 %v333, %v334
    %v336 = vshll.u32 2475754826, %v330
    %v337 = vshrl.u32 2131351028, %v331
    %v338 = vor.u32 %v336, %v337
    %v339 = vshll.u32 2131351028, %v330
    %v340 = vshrl.u32 2102212464, %v331
    %v341 = vor.u32 %v339, %v340
    %v342 = vshll.u32 2102212464, %v330
    %v343 = vshrl.u32 920167782, %v331
    %v344 = vor.u32 %v342, %v343
    %v345 = vshll.u32 920167782, %v330
    %v346 = vshrl.u32 1326507024, %v331
    %v347 = vor.u32 %v345, %v346
    %vm348 = vcmp.lt.s32.totalorder %v329, 1
    %vm349 = vcmp.lt.s32.totalorder %v329, 2
    %vm350 = vcmp.lt.s32.totalorder %v329, 3
    %vm351 = vcmp.lt.s32.totalorder %v329, 4
    %v352 = vsel %vm348, %v332, %v335
    %v353 = vsel %vm351, %v341, 2102212464
    %v354 = vsel %vm350, %v338, %v353
    %v355 = vsel %vm349, %v352, %v354
    %v356 = vsel %vm348, %v335, %v338
    %v357 = vsel %vm351, %v344, 920167782
    %v358 = vsel %vm350, %v341, %v357
    %v359 = vsel %vm349, %v356, %v358
    %v360 = vsel %vm348, %v338, %v341
    %v361 = vsel %vm351, %v347, 1326507024
    %v362 = vsel %vm350, %v344, %v361
    %v363 = vsel %vm349, %v360, %v362
    %v364 = vshll.u32 %v324, 8
    %v365 = vmul.u32.u64.compose %v364, %v363
    %v366 = vextract.low.u32 %v365
    %v367 = vextract.high.u32 %v365
    %v368 = vmul.u32.u64.compose %v364, %v359
    %v369 = vextract.low.u32 %v368
    %v370 = vextract.high.u32 %v368
    %v371 = vmul.u32 %v364, %v355
    %v372 = vadd.s32 %v367, %v369
    %vm373 = vc.u32 %v367, %v369
    %v374 = vadd.s32 %v370, 1
    %v375 = vsel %vm373, %v374, %v370
    %v376 = vadd.s32 %v371, %v375
    %v377 = vadd.s32 %v376, 536870912
    %v378 = vshrl.u32 %v377, 30
    %v379 = vshll.u32 %v378, 30
    %v380 = vsub.s32 %v376, %v379
    %vm381 = vcmp.lt.s32.totalorder %v380, 0
    %v382 = vsub.s32 0, %v380
    %v383 = vsel %vm381, %v382, %v380
    %v384 = vclz %v383
    %v385 = vsub.s32 %v384, 2
    %vm386 = vcmp.gt.s32.totalorder 0, %v385
    %v387 = vsel %vm386, 0, %v385
    %v388 = vsub.s32 32, %v387
    %v389 = vshll.u32 %v380, %v387
    %v390 = vshrl.u32 %v372, %v388
    %v391 = vor.u32 %v389, %v390
    %v392 = vsub.s32 4294967266, %v387
    %v393 = vadd.s32 %v392, 127
    %v394 = vshll.u32 %v393, 23
    %v395 = vor.u32 4788187, %v394
    %v396 = vand.u32 2147483647, %v395
    %v398 = vcvt.s32.f32 %v391
    %v399 = vmul.f32 %v398, %v396
    %v400 = vxor.u32 %v399, 2147483648
    %v401 = vsel %vm318, %v400, %v399
    %v402 = vsub.s32 4, %v378
    %v403 = vsel %vm318, %v402, %v378
    %v404 = vsel %vm317, %v205, %v401
    %v405 = vsel %vm317, 0, %v403
    %v406 = vcosq.f32.pop %v404
    %v407 = vsinq.f32.pop %v404
    %vm408 = vweird.f32 %v205
    %v409 = vadd.s32 %v405, 3
    %v410 = vand.u32 %v409, 3
    %vm411 = vcmp.lt.s32.totalorder %v410, 2
    %vm412 = vcmp.eq.s32.totalorder %v410, 0
    %v413 = vxor.u32 %v407, 2147483648
    %v414 = vsel %vm412, %v406, %v413
    %vm415 = vcmp.eq.s32.totalorder %v410, 2
    %v416 = vxor.u32 %v406, 2147483648
    %v417 = vsel %vm415, %v416, %v407
    %v418 = vsel %vm411, %v414, %v417
    %v419 = vsel %vm408, nan, %v418
    %v420 = vand.u32 2147483647, %v206
    %vm421 = vcmp.le.f32.partialorder %v420, 0.7853982
    %vm422 = vcmp.lt.s32.totalorder %v206, 0
    %v423 = vand.u32 %v206, 2139095040
    %v424 = vshrl.u32 %v423, 23
    %v425 = vsub.s32 %v424, 127
    %v426 = vand.u32 2147483647, %v206
    %v427 = vand.u32 %v426, 8388607
    %v428 = vor.u32 %v427, 8388608
    %v429 = vsub.s32 0, %v428
    %v430 = vadd.s32 %v425, 1
    %vm431 = vcmp.gt.s32.totalorder %v430, 0
    %v432 = vsel %vm431, %v430, 0
    %v433 = vshrl.u32 %v432, 5
    %v434 = vand.u32 %v432, 31
    %v435 = vsub.s32 32, %v434
    %v436 = vshrl.u32 683565275, %v435
    %v437 = vshll.u32 683565275, %v434
    %v438 = vshrl.u32 2475754826, %v435
    %v439 = vor.u32 %v437, %v438
    %v440 = vshll.u32 2475754826, %v434
    %v441 = vshrl.u32 2131351028, %v435
    %v442 = vor.u32 %v440, %v441
    %v443 = vshll.u32 2131351028, %v434
    %v444 = vshrl.u32 2102212464, %v435
    %v445 = vor.u32 %v443, %v444
    %v446 = vshll.u32 2102212464, %v434
    %v447 = vshrl.u32 920167782, %v435
    %v448 = vor.u32 %v446, %v447
    %v449 = vshll.u32 920167782, %v434
    %v450 = vshrl.u32 1326507024, %v435
    %v451 = vor.u32 %v449, %v450
    %vm452 = vcmp.lt.s32.totalorder %v433, 1
    %vm453 = vcmp.lt.s32.totalorder %v433, 2
    %vm454 = vcmp.lt.s32.totalorder %v433, 3
    %vm455 = vcmp.lt.s32.totalorder %v433, 4
    %v456 = vsel %vm452, %v436, %v439
    %v457 = vsel %vm455, %v445, 2102212464
    %v458 = vsel %vm454, %v442, %v457
    %v459 = vsel %vm453, %v456, %v458
    %v460 = vsel %vm452, %v439, %v442
    %v461 = vsel %vm455, %v448, 920167782
    %v462 = vsel %vm454, %v445, %v461
    %v463 = vsel %vm453, %v460, %v462
    %v464 = vsel %vm452, %v442, %v445
    %v465 = vsel %vm455, %v451, 1326507024
    %v466 = vsel %vm454, %v448, %v465
    %v467 = vsel %vm453, %v464, %v466
    %v468 = vshll.u32 %v428, 8
    %v469 = vmul.u32.u64.compose %v468, %v467
    %v470 = vextract.low.u32 %v469
    %v471 = vextract.high.u32 %v469
    %v472 = vmul.u32.u64.compose %v468, %v463
    %v473 = vextract.low.u32 %v472
    %v474 = vextract.high.u32 %v472
    %v475 = vmul.u32 %v468, %v459
    %v476 = vadd.s32 %v471, %v473
    %vm477 = vc.u32 %v471, %v473
    %v478 = vadd.s32 %v474, 1
    %v479 = vsel %vm477, %v478, %v474
    %v480 = vadd.s32 %v475, %v479
    %v481 = vadd.s32 %v480, 536870912
    %v482 = vshrl.u32 %v481, 30
    %v483 = vshll.u32 %v482, 30
    %v484 = vsub.s32 %v480, %v483
    %vm485 = vcmp.lt.s32.totalorder %v484, 0
    %v486 = vsub.s32 0, %v484
    %v487 = vsel %vm485, %v486, %v484
    %v488 = vclz %v487
    %v489 = vsub.s32 %v488, 2
    %vm490 = vcmp.gt.s32.totalorder 0, %v489
    %v491 = vsel %vm490, 0, %v489
    %v492 = vsub.s32 32, %v491
    %v493 = vshll.u32 %v484, %v491
    %v494 = vshrl.u32 %v476, %v492
    %v495 = vor.u32 %v493, %v494
    %v496 = vsub.s32 4294967266, %v491
    %v497 = vadd.s32 %v496, 127
    %v498 = vshll.u32 %v497, 23
    %v499 = vor.u32 4788187, %v498
    %v500 = vand.u32 2147483647, %v499
    %v502 = vcvt.s32.f32 %v495
    %v503 = vmul.f32 %v502, %v500
    %v504 = vxor.u32 %v503, 2147483648
    %v505 = vsel %vm422, %v504, %v503
    %v506 = vsub.s32 4, %v482
    %v507 = vsel %vm422, %v506, %v482
    %v508 = vsel %vm421, %v206, %v505
    %v509 = vsel %vm421, 0, %v507
    %v510 = vcosq.f32.pop %v508
    %v511 = vsinq.f32.pop %v508
    %vm512 = vweird.f32 %v206
    %v513 = vadd.s32 %v509, 3
    %v514 = vand.u32 %v513, 3
    %vm515 = vcmp.lt.s32.totalorder %v514, 2
    %vm516 = vcmp.eq.s32.totalorder %v514, 0
    %v517 = vxor.u32 %v511, 2147483648
    %v518 = vsel %vm516, %v510, %v517
    %vm519 = vcmp.eq.s32.totalorder %v514, 2
    %v520 = vxor.u32 %v510, 2147483648
    %v521 = vsel %vm519, %v520, %v511
    %v522 = vsel %vm515, %v518, %v521
    %v523 = vsel %vm512, nan, %v522
    %v524 = vand.u32 2147483647, %v207
    %vm525 = vcmp.le.f32.partialorder %v524, 0.7853982
    %vm526 = vcmp.lt.s32.totalorder %v207, 0
    %v527 = vand.u32 %v207, 2139095040
    %v528 = vshrl.u32 %v527, 23
    %v529 = vsub.s32 %v528, 127
    %v530 = vand.u32 2147483647, %v207
    %v531 = vand.u32 %v530, 8388607
    %v532 = vor.u32 %v531, 8388608
    %v533 = vsub.s32 0, %v532
    %v534 = vadd.s32 %v529, 1
    %vm535 = vcmp.gt.s32.totalorder %v534, 0
    %v536 = vsel %vm535, %v534, 0
    %v537 = vshrl.u32 %v536, 5
    %v538 = vand.u32 %v536, 31
    %v539 = vsub.s32 32, %v538
    %v540 = vshrl.u32 683565275, %v539
    %v541 = vshll.u32 683565275, %v538
    %v542 = vshrl.u32 2475754826, %v539
    %v543 = vor.u32 %v541, %v542
    %v544 = vshll.u32 2475754826, %v538
    %v545 = vshrl.u32 2131351028, %v539
    %v546 = vor.u32 %v544, %v545
    %v547 = vshll.u32 2131351028, %v538
    %v548 = vshrl.u32 2102212464, %v539
    %v549 = vor.u32 %v547, %v548
    %v550 = vshll.u32 2102212464, %v538
    %v551 = vshrl.u32 920167782, %v539
    %v552 = vor.u32 %v550, %v551
    %v553 = vshll.u32 920167782, %v538
    %v554 = vshrl.u32 1326507024, %v539
    %v555 = vor.u32 %v553, %v554
    %vm556 = vcmp.lt.s32.totalorder %v537, 1
    %vm557 = vcmp.lt.s32.totalorder %v537, 2
    %vm558 = vcmp.lt.s32.totalorder %v537, 3
    %vm559 = vcmp.lt.s32.totalorder %v537, 4
    %v560 = vsel %vm556, %v540, %v543
    %v561 = vsel %vm559, %v549, 2102212464
    %v562 = vsel %vm558, %v546, %v561
    %v563 = vsel %vm557, %v560, %v562
    %v564 = vsel %vm556, %v543, %v546
    %v565 = vsel %vm559, %v552, 920167782
    %v566 = vsel %vm558, %v549, %v565
    %v567 = vsel %vm557, %v564, %v566
    %v568 = vsel %vm556, %v546, %v549
    %v569 = vsel %vm559, %v555, 1326507024
    %v570 = vsel %vm558, %v552, %v569
    %v571 = vsel %vm557, %v568, %v570
    %v572 = vshll.u32 %v532, 8
    %v573 = vmul.u32.u64.compose %v572, %v571
    %v574 = vextract.low.u32 %v573
    %v575 = vextract.high.u32 %v573
    %v576 = vmul.u32.u64.compose %v572, %v567
    %v577 = vextract.low.u32 %v576
    %v578 = vextract.high.u32 %v576
    %v579 = vmul.u32 %v572, %v563
    %v580 = vadd.s32 %v575, %v577
    %vm581 = vc.u32 %v575, %v577
    %v582 = vadd.s32 %v578, 1
    %v583 = vsel %vm581, %v582, %v578
    %v584 = vadd.s32 %v579, %v583
    %v585 = vadd.s32 %v584, 536870912
    %v586 = vshrl.u32 %v585, 30
    %v587 = vshll.u32 %v586, 30
    %v588 = vsub.s32 %v584, %v587
    %vm589 = vcmp.lt.s32.totalorder %v588, 0
    %v590 = vsub.s32 0, %v588
    %v591 = vsel %vm589, %v590, %v588
    %v592 = vclz %v591
    %v593 = vsub.s32 %v592, 2
    %vm594 = vcmp.gt.s32.totalorder 0, %v593
    %v595 = vsel %vm594, 0, %v593
    %v596 = vsub.s32 32, %v595
    %v597 = vshll.u32 %v588, %v595
    %v598 = vshrl.u32 %v580, %v596
    %v599 = vor.u32 %v597, %v598
    %v600 = vsub.s32 4294967266, %v595
    %v601 = vadd.s32 %v600, 127
    %v602 = vshll.u32 %v601, 23
    %v603 = vor.u32 4788187, %v602
    %v604 = vand.u32 2147483647, %v603
    %v606 = vcvt.s32.f32 %v599
    %v607 = vmul.f32 %v606, %v604
    %v608 = vxor.u32 %v607, 2147483648
    %v609 = vsel %vm526, %v608, %v607
    %v610 = vsub.s32 4, %v586
    %v611 = vsel %vm526, %v610, %v586
    %v612 = vsel %vm525, %v207, %v609
    %v613 = vsel %vm525, 0, %v611
    %v614 = vcosq.f32.pop %v612
    %v615 = vsinq.f32.pop %v612
    %vm616 = vweird.f32 %v207
    %v617 = vadd.s32 %v613, 3
    %v618 = vand.u32 %v617, 3
    %vm619 = vcmp.lt.s32.totalorder %v618, 2
    %vm620 = vcmp.eq.s32.totalorder %v618, 0
    %v621 = vxor.u32 %v615, 2147483648
    %v622 = vsel %vm620, %v614, %v621
    %vm623 = vcmp.eq.s32.totalorder %v618, 2
    %v624 = vxor.u32 %v614, 2147483648
    %v625 = vsel %vm623, %v624, %v615
    %v626 = vsel %vm619, %v622, %v625
    %v627 = vsel %vm616, nan, %v626
    %v628 = vand.u32 2147483647, %v208
    %vm629 = vcmp.le.f32.partialorder %v628, 0.7853982
    %vm630 = vcmp.lt.s32.totalorder %v208, 0
    %v631 = vand.u32 %v208, 2139095040
    %v632 = vshrl.u32 %v631, 23
    %v633 = vsub.s32 %v632, 127
    %v634 = vand.u32 2147483647, %v208
    %v635 = vand.u32 %v634, 8388607
    %v636 = vor.u32 %v635, 8388608
    %v637 = vsub.s32 0, %v636
    %v638 = vadd.s32 %v633, 1
    %vm639 = vcmp.gt.s32.totalorder %v638, 0
    %v640 = vsel %vm639, %v638, 0
    %v641 = vshrl.u32 %v640, 5
    %v642 = vand.u32 %v640, 31
    %v643 = vsub.s32 32, %v642
    %v644 = vshrl.u32 683565275, %v643
    %v645 = vshll.u32 683565275, %v642
    %v646 = vshrl.u32 2475754826, %v643
    %v647 = vor.u32 %v645, %v646
    %v648 = vshll.u32 2475754826, %v642
    %v649 = vshrl.u32 2131351028, %v643
    %v650 = vor.u32 %v648, %v649
    %v651 = vshll.u32 2131351028, %v642
    %v652 = vshrl.u32 2102212464, %v643
    %v653 = vor.u32 %v651, %v652
    %v654 = vshll.u32 2102212464, %v642
    %v655 = vshrl.u32 920167782, %v643
    %v656 = vor.u32 %v654, %v655
    %v657 = vshll.u32 920167782, %v642
    %v658 = vshrl.u32 1326507024, %v643
    %v659 = vor.u32 %v657, %v658
    %vm660 = vcmp.lt.s32.totalorder %v641, 1
    %vm661 = vcmp.lt.s32.totalorder %v641, 2
    %vm662 = vcmp.lt.s32.totalorder %v641, 3
    %vm663 = vcmp.lt.s32.totalorder %v641, 4
    %v664 = vsel %vm660, %v644, %v647
    %v665 = vsel %vm663, %v653, 2102212464
    %v666 = vsel %vm662, %v650, %v665
    %v667 = vsel %vm661, %v664, %v666
    %v668 = vsel %vm660, %v647, %v650
    %v669 = vsel %vm663, %v656, 920167782
    %v670 = vsel %vm662, %v653, %v669
    %v671 = vsel %vm661, %v668, %v670
    %v672 = vsel %vm660, %v650, %v653
    %v673 = vsel %vm663, %v659, 1326507024
    %v674 = vsel %vm662, %v656, %v673
    %v675 = vsel %vm661, %v672, %v674
    %v676 = vshll.u32 %v636, 8
    %v677 = vmul.u32.u64.compose %v676, %v675
    %v678 = vextract.low.u32 %v677
    %v679 = vextract.high.u32 %v677
    %v680 = vmul.u32.u64.compose %v676, %v671
    %v681 = vextract.low.u32 %v680
    %v682 = vextract.high.u32 %v680
    %v683 = vmul.u32 %v676, %v667
    %v684 = vadd.s32 %v679, %v681
    %vm685 = vc.u32 %v679, %v681
    %v686 = vadd.s32 %v682, 1
    %v687 = vsel %vm685, %v686, %v682
    %v688 = vadd.s32 %v683, %v687
    %v689 = vadd.s32 %v688, 536870912
    %v690 = vshrl.u32 %v689, 30
    %v691 = vshll.u32 %v690, 30
    %v692 = vsub.s32 %v688, %v691
    %vm693 = vcmp.lt.s32.totalorder %v692, 0
    %v694 = vsub.s32 0, %v692
    %v695 = vsel %vm693, %v694, %v692
    %v696 = vclz %v695
    %v697 = vsub.s32 %v696, 2
    %vm698 = vcmp.gt.s32.totalorder 0, %v697
    %v699 = vsel %vm698, 0, %v697
    %v700 = vsub.s32 32, %v699
    %v701 = vshll.u32 %v692, %v699
    %v702 = vshrl.u32 %v684, %v700
    %v703 = vor.u32 %v701, %v702
    %v704 = vsub.s32 4294967266, %v699
    %v705 = vadd.s32 %v704, 127
    %v706 = vshll.u32 %v705, 23
    %v707 = vor.u32 4788187, %v706
    %v708 = vand.u32 2147483647, %v707
    %v710 = vcvt.s32.f32 %v703
    %v711 = vmul.f32 %v710, %v708
    %v712 = vxor.u32 %v711, 2147483648
    %v713 = vsel %vm630, %v712, %v711
    %v714 = vsub.s32 4, %v690
    %v715 = vsel %vm630, %v714, %v690
    %v716 = vsel %vm629, %v208, %v713
    %v717 = vsel %vm629, 0, %v715
    %v718 = vcosq.f32.pop %v716
    %v719 = vsinq.f32.pop %v716
    %vm720 = vweird.f32 %v208
    %v721 = vadd.s32 %v717, 3
    %v722 = vand.u32 %v721, 3
    %vm723 = vcmp.lt.s32.totalorder %v722, 2
    %vm724 = vcmp.eq.s32.totalorder %v722, 0
    %v725 = vxor.u32 %v719, 2147483648
    %v726 = vsel %vm724, %v718, %v725
    %vm727 = vcmp.eq.s32.totalorder %v722, 2
    %v728 = vxor.u32 %v718, 2147483648
    %v729 = vsel %vm727, %v728, %v719
    %v730 = vsel %vm723, %v726, %v729
    %v731 = vsel %vm720, nan, %v730
    %v732 = vand.u32 2147483647, %v209
    %vm733 = vcmp.le.f32.partialorder %v732, 0.7853982
    %vm734 = vcmp.lt.s32.totalorder %v209, 0
    %v735 = vand.u32 %v209, 2139095040
    %v736 = vshrl.u32 %v735, 23
    %v737 = vsub.s32 %v736, 127
    %v738 = vand.u32 2147483647, %v209
    %v739 = vand.u32 %v738, 8388607
    %v740 = vor.u32 %v739, 8388608
    %v741 = vsub.s32 0, %v740
    %v742 = vadd.s32 %v737, 1
    %vm743 = vcmp.gt.s32.totalorder %v742, 0
    %v744 = vsel %vm743, %v742, 0
    %v745 = vshrl.u32 %v744, 5
    %v746 = vand.u32 %v744, 31
    %v747 = vsub.s32 32, %v746
    %v748 = vshrl.u32 683565275, %v747
    %v749 = vshll.u32 683565275, %v746
    %v750 = vshrl.u32 2475754826, %v747
    %v751 = vor.u32 %v749, %v750
    %v752 = vshll.u32 2475754826, %v746
    %v753 = vshrl.u32 2131351028, %v747
    %v754 = vor.u32 %v752, %v753
    %v755 = vshll.u32 2131351028, %v746
    %v756 = vshrl.u32 2102212464, %v747
    %v757 = vor.u32 %v755, %v756
    %v758 = vshll.u32 2102212464, %v746
    %v759 = vshrl.u32 920167782, %v747
    %v760 = vor.u32 %v758, %v759
    %v761 = vshll.u32 920167782, %v746
    %v762 = vshrl.u32 1326507024, %v747
    %v763 = vor.u32 %v761, %v762
    %vm764 = vcmp.lt.s32.totalorder %v745, 1
    %vm765 = vcmp.lt.s32.totalorder %v745, 2
    %vm766 = vcmp.lt.s32.totalorder %v745, 3
    %vm767 = vcmp.lt.s32.totalorder %v745, 4
    %v768 = vsel %vm764, %v748, %v751
    %v769 = vsel %vm767, %v757, 2102212464
    %v770 = vsel %vm766, %v754, %v769
    %v771 = vsel %vm765, %v768, %v770
    %v772 = vsel %vm764, %v751, %v754
    %v773 = vsel %vm767, %v760, 920167782
    %v774 = vsel %vm766, %v757, %v773
    %v775 = vsel %vm765, %v772, %v774
    %v776 = vsel %vm764, %v754, %v757
    %v777 = vsel %vm767, %v763, 1326507024
    %v778 = vsel %vm766, %v760, %v777
    %v779 = vsel %vm765, %v776, %v778
    %v780 = vshll.u32 %v740, 8
    %v781 = vmul.u32.u64.compose %v780, %v779
    %v782 = vextract.low.u32 %v781
    %v783 = vextract.high.u32 %v781
    %v784 = vmul.u32.u64.compose %v780, %v775
    %v785 = vextract.low.u32 %v784
    %v786 = vextract.high.u32 %v784
    %v787 = vmul.u32 %v780, %v771
    %v788 = vadd.s32 %v783, %v785
    %vm789 = vc.u32 %v783, %v785
    %v790 = vadd.s32 %v786, 1
    %v791 = vsel %vm789, %v790, %v786
    %v792 = vadd.s32 %v787, %v791
    %v793 = vadd.s32 %v792, 536870912
    %v794 = vshrl.u32 %v793, 30
    %v795 = vshll.u32 %v794, 30
    %v796 = vsub.s32 %v792, %v795
    %vm797 = vcmp.lt.s32.totalorder %v796, 0
    %v798 = vsub.s32 0, %v796
    %v799 = vsel %vm797, %v798, %v796
    %v800 = vclz %v799
    %v801 = vsub.s32 %v800, 2
    %vm802 = vcmp.gt.s32.totalorder 0, %v801
    %v803 = vsel %vm802, 0, %v801
    %v804 = vsub.s32 32, %v803
    %v805 = vshll.u32 %v796, %v803
    %v806 = vshrl.u32 %v788, %v804
    %v807 = vor.u32 %v805, %v806
    %v808 = vsub.s32 4294967266, %v803
    %v809 = vadd.s32 %v808, 127
    %v810 = vshll.u32 %v809, 23
    %v811 = vor.u32 4788187, %v810
    %v812 = vand.u32 2147483647, %v811
    %v814 = vcvt.s32.f32 %v807
    %v815 = vmul.f32 %v814, %v812
    %v816 = vxor.u32 %v815, 2147483648
    %v817 = vsel %vm734, %v816, %v815
    %v818 = vsub.s32 4, %v794
    %v819 = vsel %vm734, %v818, %v794
    %v820 = vsel %vm733, %v209, %v817
    %v821 = vsel %vm733, 0, %v819
    %v822 = vcosq.f32.pop %v820
    %v823 = vsinq.f32.pop %v820
    %vm824 = vweird.f32 %v209
    %v825 = vadd.s32 %v821, 3
    %v826 = vand.u32 %v825, 3
    %vm827 = vcmp.lt.s32.totalorder %v826, 2
    %vm828 = vcmp.eq.s32.totalorder %v826, 0
    %v829 = vxor.u32 %v823, 2147483648
    %v830 = vsel %vm828, %v822, %v829
    %vm831 = vcmp.eq.s32.totalorder %v826, 2
    %v832 = vxor.u32 %v822, 2147483648
    %v833 = vsel %vm831, %v832, %v823
    %v834 = vsel %vm827, %v830, %v833
    %v835 = vsel %vm824, nan, %v834
    %v836 = vand.u32 2147483647, %v210
    %vm837 = vcmp.le.f32.partialorder %v836, 0.7853982
    %vm838 = vcmp.lt.s32.totalorder %v210, 0
    %v839 = vand.u32 %v210, 2139095040
    %v840 = vshrl.u32 %v839, 23
    %v841 = vsub.s32 %v840, 127
    %v842 = vand.u32 2147483647, %v210
    %v843 = vand.u32 %v842, 8388607
    %v844 = vor.u32 %v843, 8388608
    %v845 = vsub.s32 0, %v844
    %v846 = vadd.s32 %v841, 1
    %vm847 = vcmp.gt.s32.totalorder %v846, 0
    %v848 = vsel %vm847, %v846, 0
    %v849 = vshrl.u32 %v848, 5
    %v850 = vand.u32 %v848, 31
    %v851 = vsub.s32 32, %v850
    %v852 = vshrl.u32 683565275, %v851
    %v853 = vshll.u32 683565275, %v850
    %v854 = vshrl.u32 2475754826, %v851
    %v855 = vor.u32 %v853, %v854
    %v856 = vshll.u32 2475754826, %v850
    %v857 = vshrl.u32 2131351028, %v851
    %v858 = vor.u32 %v856, %v857
    %v859 = vshll.u32 2131351028, %v850
    %v860 = vshrl.u32 2102212464, %v851
    %v861 = vor.u32 %v859, %v860
    %v862 = vshll.u32 2102212464, %v850
    %v863 = vshrl.u32 920167782, %v851
    %v864 = vor.u32 %v862, %v863
    %v865 = vshll.u32 920167782, %v850
    %v866 = vshrl.u32 1326507024, %v851
    %v867 = vor.u32 %v865, %v866
    %vm868 = vcmp.lt.s32.totalorder %v849, 1
    %vm869 = vcmp.lt.s32.totalorder %v849, 2
    %vm870 = vcmp.lt.s32.totalorder %v849, 3
    %vm871 = vcmp.lt.s32.totalorder %v849, 4
    %v872 = vsel %vm868, %v852, %v855
    %v873 = vsel %vm871, %v861, 2102212464
    %v874 = vsel %vm870, %v858, %v873
    %v875 = vsel %vm869, %v872, %v874
    %v876 = vsel %vm868, %v855, %v858
    %v877 = vsel %vm871, %v864, 920167782
    %v878 = vsel %vm870, %v861, %v877
    %v879 = vsel %vm869, %v876, %v878
    %v880 = vsel %vm868, %v858, %v861
    %v881 = vsel %vm871, %v867, 1326507024
    %v882 = vsel %vm870, %v864, %v881
    %v883 = vsel %vm869, %v880, %v882
    %v884 = vshll.u32 %v844, 8
    %v885 = vmul.u32.u64.compose %v884, %v883
    %v886 = vextract.low.u32 %v885
    %v887 = vextract.high.u32 %v885
    %v888 = vmul.u32.u64.compose %v884, %v879
    %v889 = vextract.low.u32 %v888
    %v890 = vextract.high.u32 %v888
    %v891 = vmul.u32 %v884, %v875
    %v892 = vadd.s32 %v887, %v889
    %vm893 = vc.u32 %v887, %v889
    %v894 = vadd.s32 %v890, 1
    %v895 = vsel %vm893, %v894, %v890
    %v896 = vadd.s32 %v891, %v895
    %v897 = vadd.s32 %v896, 536870912
    %v898 = vshrl.u32 %v897, 30
    %v899 = vshll.u32 %v898, 30
    %v900 = vsub.s32 %v896, %v899
    %vm901 = vcmp.lt.s32.totalorder %v900, 0
    %v902 = vsub.s32 0, %v900
    %v903 = vsel %vm901, %v902, %v900
    %v904 = vclz %v903
    %v905 = vsub.s32 %v904, 2
    %vm906 = vcmp.gt.s32.totalorder 0, %v905
    %v907 = vsel %vm906, 0, %v905
    %v908 = vsub.s32 32, %v907
    %v909 = vshll.u32 %v900, %v907
    %v910 = vshrl.u32 %v892, %v908
    %v911 = vor.u32 %v909, %v910
    %v912 = vsub.s32 4294967266, %v907
    %v913 = vadd.s32 %v912, 127
    %v914 = vshll.u32 %v913, 23
    %v915 = vor.u32 4788187, %v914
    %v916 = vand.u32 2147483647, %v915
    %v918 = vcvt.s32.f32 %v911
    %v919 = vmul.f32 %v918, %v916
    %v920 = vxor.u32 %v919, 2147483648
    %v921 = vsel %vm838, %v920, %v919
    %v922 = vsub.s32 4, %v898
    %v923 = vsel %vm838, %v922, %v898
    %v924 = vsel %vm837, %v210, %v921
    %v925 = vsel %vm837, 0, %v923
    %v926 = vcosq.f32.pop %v924
    %v927 = vsinq.f32.pop %v924
    %vm928 = vweird.f32 %v210
    %v929 = vadd.s32 %v925, 3
    %v930 = vand.u32 %v929, 3
    %vm931 = vcmp.lt.s32.totalorder %v930, 2
    %vm932 = vcmp.eq.s32.totalorder %v930, 0
    %v933 = vxor.u32 %v927, 2147483648
    %v934 = vsel %vm932, %v926, %v933
    %vm935 = vcmp.eq.s32.totalorder %v930, 2
    %v936 = vxor.u32 %v926, 2147483648
    %v937 = vsel %vm935, %v936, %v927
    %v938 = vsel %vm931, %v934, %v937
    %v939 = vsel %vm928, nan, %v938
    %v940 = vand.u32 2147483647, %v211
    %vm941 = vcmp.le.f32.partialorder %v940, 0.7853982
    %vm942 = vcmp.lt.s32.totalorder %v211, 0
    %v943 = vand.u32 %v211, 2139095040
    %v944 = vshrl.u32 %v943, 23
    %v945 = vsub.s32 %v944, 127
    %v946 = vand.u32 2147483647, %v211
    %v947 = vand.u32 %v946, 8388607
    %v948 = vor.u32 %v947, 8388608
    %v949 = vsub.s32 0, %v948
    %v950 = vadd.s32 %v945, 1
    %vm951 = vcmp.gt.s32.totalorder %v950, 0
    %v952 = vsel %vm951, %v950, 0
    %v953 = vshrl.u32 %v952, 5
    %v954 = vand.u32 %v952, 31
    %v955 = vsub.s32 32, %v954
    %v956 = vshrl.u32 683565275, %v955
    %v957 = vshll.u32 683565275, %v954
    %v958 = vshrl.u32 2475754826, %v955
    %v959 = vor.u32 %v957, %v958
    %v960 = vshll.u32 2475754826, %v954
    %v961 = vshrl.u32 2131351028, %v955
    %v962 = vor.u32 %v960, %v961
    %v963 = vshll.u32 2131351028, %v954
    %v964 = vshrl.u32 2102212464, %v955
    %v965 = vor.u32 %v963, %v964
    %v966 = vshll.u32 2102212464, %v954
    %v967 = vshrl.u32 920167782, %v955
    %v968 = vor.u32 %v966, %v967
    %v969 = vshll.u32 920167782, %v954
    %v970 = vshrl.u32 1326507024, %v955
    %v971 = vor.u32 %v969, %v970
    %vm972 = vcmp.lt.s32.totalorder %v953, 1
    %vm973 = vcmp.lt.s32.totalorder %v953, 2
    %vm974 = vcmp.lt.s32.totalorder %v953, 3
    %vm975 = vcmp.lt.s32.totalorder %v953, 4
    %v976 = vsel %vm972, %v956, %v959
    %v977 = vsel %vm975, %v965, 2102212464
    %v978 = vsel %vm974, %v962, %v977
    %v979 = vsel %vm973, %v976, %v978
    %v980 = vsel %vm972, %v959, %v962
    %v981 = vsel %vm975, %v968, 920167782
    %v982 = vsel %vm974, %v965, %v981
    %v983 = vsel %vm973, %v980, %v982
    %v984 = vsel %vm972, %v962, %v965
    %v985 = vsel %vm975, %v971, 1326507024
    %v986 = vsel %vm974, %v968, %v985
    %v987 = vsel %vm973, %v984, %v986
    %v988 = vshll.u32 %v948, 8
    %v989 = vmul.u32.u64.compose %v988, %v987
    %v990 = vextract.low.u32 %v989
    %v991 = vextract.high.u32 %v989
    %v992 = vmul.u32.u64.compose %v988, %v983
    %v993 = vextract.low.u32 %v992
    %v994 = vextract.high.u32 %v992
    %v995 = vmul.u32 %v988, %v979
    %v996 = vadd.s32 %v991, %v993
    %vm997 = vc.u32 %v991, %v993
    %v998 = vadd.s32 %v994, 1
    %v999 = vsel %vm997, %v998, %v994
    %v1000 = vadd.s32 %v995, %v999
    %v1001 = vadd.s32 %v1000, 536870912
    %v1002 = vshrl.u32 %v1001, 30
    %v1003 = vshll.u32 %v1002, 30
    %v1004 = vsub.s32 %v1000, %v1003
    %vm1005 = vcmp.lt.s32.totalorder %v1004, 0
    %v1006 = vsub.s32 0, %v1004
    %v1007 = vsel %vm1005, %v1006, %v1004
    %v1008 = vclz %v1007
    %v1009 = vsub.s32 %v1008, 2
    %vm1010 = vcmp.gt.s32.totalorder 0, %v1009
    %v1011 = vsel %vm1010, 0, %v1009
    %v1012 = vsub.s32 32, %v1011
    %v1013 = vshll.u32 %v1004, %v1011
    %v1014 = vshrl.u32 %v996, %v1012
    %v1015 = vor.u32 %v1013, %v1014
    %v1016 = vsub.s32 4294967266, %v1011
    %v1017 = vadd.s32 %v1016, 127
    %v1018 = vshll.u32 %v1017, 23
    %v1019 = vor.u32 4788187, %v1018
    %v1020 = vand.u32 2147483647, %v1019
    %v1022 = vcvt.s32.f32 %v1015
    %v1023 = vmul.f32 %v1022, %v1020
    %v1024 = vxor.u32 %v1023, 2147483648
    %v1025 = vsel %vm942, %v1024, %v1023
    %v1026 = vsub.s32 4, %v1002
    %v1027 = vsel %vm942, %v1026, %v1002
    %v1028 = vsel %vm941, %v211, %v1025
    %v1029 = vsel %vm941, 0, %v1027
    %v1030 = vcosq.f32.pop %v1028
    %v1031 = vsinq.f32.pop %v1028
    %vm1032 = vweird.f32 %v211
    %v1033 = vadd.s32 %v1029, 3
    %v1034 = vand.u32 %v1033, 3
    %vm1035 = vcmp.lt.s32.totalorder %v1034, 2
    %vm1036 = vcmp.eq.s32.totalorder %v1034, 0
    %v1037 = vxor.u32 %v1031, 2147483648
    %v1038 = vsel %vm1036, %v1030, %v1037
    %vm1039 = vcmp.eq.s32.totalorder %v1034, 2
    %v1040 = vxor.u32 %v1030, 2147483648
    %v1041 = vsel %vm1039, %v1040, %v1031
    %v1042 = vsel %vm1035, %v1038, %v1041
    %v1043 = vsel %vm1032, nan, %v1042
    %v1044 = vld [vmem:[%s4] sm:$0xff]
    %v1045 = vld [vmem:[%s4 + $0x8] sm:$0xff]
    %v1046 = vld [vmem:[%s4 + $0x10] sm:$0xff]
    %v1047 = vld [vmem:[%s4 + $0x18] sm:$0xff]
    %v1048 = vld [vmem:[%s5] sm:$0xff]
    %v1049 = vld [vmem:[%s5 + $0x8] sm:$0xff]
    %v1050 = vld [vmem:[%s5 + $0x10] sm:$0xff]
    %v1051 = vld [vmem:[%s5 + $0x18] sm:$0xff]
    %1053 = vset.pattern.permute.xlu0 0
    %1054 = vperm.xlu0 %1053, %v1048
    %v1055 = vpop.permute.xlu0 %1054
    %1058 = vset.pattern.permute.xlu0 0
    %1059 = vperm.xlu0 %1058, %v1049
    %v1060 = vpop.permute.xlu0 %1059
    %1063 = vset.pattern.permute.xlu0 0
    %1064 = vperm.xlu0 %1063, %v1050
    %v1065 = vpop.permute.xlu0 %1064
    %1068 = vset.pattern.permute.xlu0 0
    %1069 = vperm.xlu0 %1068, %v1051
    %v1070 = vpop.permute.xlu0 %1069
    %vm1072 = vcmask 523264
    %v1074 = vsel %vm1072, %v1044, 0
    %v1077 = vsel %vm1072, %v1045, 0
    %v1080 = vsel %vm1072, %v1046, 0
    %v1083 = vsel %vm1072, %v1047, 0
    %1085 = vmatprep.subr.mxu0 0.0
    %1086 = vmatpush1.msra.mxu0 0.0
    %1087 = vmatprep.subr.mxu0 0.0
    %1088 = vmatpush1.msra.mxu0 0.0
    %1089 = vmatprep.subr.mxu0 0.0
    %1090 = vmatpush1.msra.mxu0 0.0
    %1091 = vmatprep.subr.mxu0 0.0
    %1092 = vmatpush1.msra.mxu0 0.0
    %1093 = vmatprep.subr.mxu0 0.0
    %1094 = vmatpush1.msra.mxu0 0.0
    %1095 = vmatprep.subr.mxu0 0.0
    %1096 = vmatpush1.msra.mxu0 0.0
    %1097 = vmatprep.subr.mxu0 0.0
    %1098 = vmatpush1.msra.mxu0 0.0
    %1099 = vmatprep.subr.mxu0 0.0
    %1100 = vmatpush1.msra.mxu0 0.0
    %1101 = vmatprep.subr.mxu0 0.0
    %1102 = vmatpush1.msra.mxu0 %v1043
    %1103 = vmatprep.subr.mxu0 0.0
    %1104 = vmatpush1.msra.mxu0 %v939
    %1105 = vmatprep.subr.mxu0 0.0
    %1106 = vmatpush1.msra.mxu0 %v835
    %1107 = vmatprep.subr.mxu0 0.0
    %1108 = vmatpush1.msra.mxu0 %v731
    %1109 = vmatprep.subr.mxu0 0.0
    %1110 = vmatpush1.msra.mxu0 %v627
    %1111 = vmatprep.subr.mxu0 0.0
    %1112 = vmatpush1.msra.mxu0 %v523
    %1113 = vmatprep.subr.mxu0 0.0
    %1114 = vmatpush1.msra.mxu0 %v419
    %1115 = vmatprep.subr.mxu0 0.0
    %1116 = vmatpush1.msra.mxu0 %v315
    %1117 = vmatprep.subr.mxu0 0.0
    %1118 = vmatpush2.msra.mxu0 0.0
    %1119 = vmatprep.subr.mxu0 0.0
    %1120 = vmatpush2.msra.mxu0 0.0
    %1121 = vmatprep.subr.mxu0 0.0
    %1122 = vmatpush2.msra.mxu0 0.0
    %1123 = vmatprep.subr.mxu0 0.0
    %1124 = vmatpush2.msra.mxu0 0.0
    %1125 = vmatprep.subr.mxu0 0.0
    %1126 = vmatpush2.msra.mxu0 0.0
    %1127 = vmatprep.subr.mxu0 0.0
    %1128 = vmatpush2.msra.mxu0 0.0
    %1129 = vmatprep.subr.mxu0 0.0
    %1130 = vmatpush2.msra.mxu0 0.0
    %1131 = vmatprep.subr.mxu0 0.0
    %1132 = vmatpush2.msra.mxu0 0.0
    %1133 = vmatprep.subr.mxu0 0.0
    %1134 = vmatpush2.msra.mxu0 0.0
    %1135 = vmatprep.subr.mxu0 0.0
    %1136 = vmatpush2.msra.mxu0 0.0
    %1137 = vmatprep.subr.mxu0 0.0
    %1138 = vmatpush2.msra.mxu0 0.0
    %1139 = vmatprep.subr.mxu0 0.0
    %1140 = vmatpush2.msra.mxu0 0.0
    %1141 = vmatprep.subr.mxu0 0.0
    %1142 = vmatpush2.msra.mxu0 0.0
    %1143 = vmatprep.subr.mxu0 0.0
    %1144 = vmatpush2.msra.mxu0 0.0
    %1145 = vmatprep.subr.mxu0 0.0
    %1146 = vmatpush2.msra.mxu0 0.0
    %1147 = vmatprep.subr.mxu0 0.0
    %1148 = vmatpush2.msra.mxu0 0.0
    %1149 = vmatprep.mubr.f32.mxu0 0.0
    %1150 = vmatmul.mubr.f32.gmra.mxu0 %v1074
    %v1151 = vpop.f32.mrf.mxu0
    %v1152 = vadd.f32 %v1055, %v1151
    %v1153 = vpop.f32.mrf.mxu0
    %1154 = vmatprep.mubr.f32.mxu0 0.0
    %1155 = vmatmul.mubr.f32.gmra.mxu0 %v1077
    %v1156 = vpop.f32.mrf.mxu0
    %v1157 = vadd.f32 %v1060, %v1156
    %v1158 = vpop.f32.mrf.mxu0
    %1159 = vmatprep.mubr.f32.mxu0 0.0
    %1160 = vmatmul.mubr.f32.gmra.mxu0 %v1080
    %v1161 = vpop.f32.mrf.mxu0
    %v1162 = vadd.f32 %v1065, %v1161
    %v1163 = vpop.f32.mrf.mxu0
    %1164 = vmatprep.mubr.f32.mxu0 0.0
    %1165 = vmatmul.mubr.f32.gmra.mxu0 %v1083
    %v1166 = vpop.f32.mrf.mxu0
    %v1167 = vadd.f32 %v1070, %v1166
    %v1168 = vpop.f32.mrf.mxu0
    %1169 = vdwg.mxu0
    %v1170 = vtanh.pop %v1152
    %v1171 = vtanh.pop %v1157
    %v1172 = vtanh.pop %v1162
    %v1173 = vtanh.pop %v1167
    %v1174 = vld [vmem:[%s6] sm:$0xff]
    %v1175 = vld [vmem:[%s6 + $0x8] sm:$0xff]
    %v1176 = vld [vmem:[%s6 + $0x10] sm:$0xff]
    %v1177 = vld [vmem:[%s6 + $0x18] sm:$0xff]
    %1178 = vxpose.xlu0.b32.start [1/16] %v1170, 128
    %1179 = vxpose.xlu0.b32.cont [2/16] %v1171, 128
    %1180 = vxpose.xlu0.b32.cont [3/16] %v1172, 128
    %1181 = vxpose.xlu0.b32.cont [4/16] %v1173, 128
    %1182 = vxpose.xlu0.b32.cont [5/16] 0.0, 128
    %1183 = vxpose.xlu0.b32.cont [6/16] 0.0, 128
    %1184 = vxpose.xlu0.b32.cont [7/16] 0.0, 128
    %1185 = vxpose.xlu0.b32.cont [8/16] 0.0, 128
    %1186 = vxpose.xlu0.b32.cont [9/16] 0.0, 128
    %1187 = vxpose.xlu0.b32.cont [10/16] 0.0, 128
    %1188 = vxpose.xlu0.b32.cont [11/16] 0.0, 128
    %1189 = vxpose.xlu0.b32.cont [12/16] 0.0, 128
    %1190 = vxpose.xlu0.b32.cont [13/16] 0.0, 128
    %1191 = vxpose.xlu0.b32.cont [14/16] 0.0, 128
    %1192 = vxpose.xlu0.b32.cont [15/16] 0.0, 128
    %1193 = vxpose.xlu0.b32.end [16/16] 0.0, 128
    %v1194 = vpop.trf.xlu0
    %v1195 = vpop.trf.xlu0
    %v1196 = vpop.trf.xlu0
    %v1197 = vpop.trf.xlu0
    %v1198 = vpop.trf.xlu0
    %v1199 = vpop.trf.xlu0
    %v1200 = vpop.trf.xlu0
    %v1201 = vpop.trf.xlu0
    %v1202 = vpop.trf.xlu0
    %v1203 = vpop.trf.xlu0
    %v1204 = vpop.trf.xlu0
    %v1205 = vpop.trf.xlu0
    %v1206 = vpop.trf.xlu0
    %v1207 = vpop.trf.xlu0
    %v1208 = vpop.trf.xlu0
    %v1209 = vpop.trf.xlu0
    %vm1210 = vcmask 261120
    %v1212 = vsel %vm1210, %v1194, 0
    %v1215 = vsel %vm1210, %v1195, 0
    %1217 = vmatprep.subr.mxu0 0.0
    %1218 = vmatpush1.msra.mxu0 0.0
    %1219 = vmatprep.subr.mxu0 0.0
    %1220 = vmatpush1.msra.mxu0 0.0
    %1221 = vmatprep.subr.mxu0 0.0
    %1222 = vmatpush1.msra.mxu0 0.0
    %1223 = vmatprep.subr.mxu0 0.0
    %1224 = vmatpush1.msra.mxu0 0.0
    %1225 = vmatprep.subr.mxu0 0.0
    %1226 = vmatpush1.msra.mxu0 0.0
    %1227 = vmatprep.subr.mxu0 0.0
    %1228 = vmatpush1.msra.mxu0 0.0
    %1229 = vmatprep.subr.mxu0 0.0
    %1230 = vmatpush1.msra.mxu0 0.0
    %1231 = vmatprep.subr.mxu0 0.0
    %1232 = vmatpush1.msra.mxu0 0.0
    %1233 = vmatprep.subr.mxu0 0.0
    %1234 = vmatpush1.msra.mxu0 0.0
    %1235 = vmatprep.subr.mxu0 0.0
    %1236 = vmatpush1.msra.mxu0 0.0
    %1237 = vmatprep.subr.mxu0 0.0
    %1238 = vmatpush1.msra.mxu0 0.0
    %1239 = vmatprep.subr.mxu0 0.0
    %1240 = vmatpush1.msra.mxu0 0.0
    %1241 = vmatprep.subr.mxu0 0.0
    %1242 = vmatpush1.msra.mxu0 %v1177
    %1243 = vmatprep.subr.mxu0 0.0
    %1244 = vmatpush1.msra.mxu0 %v1176
    %1245 = vmatprep.subr.mxu0 0.0
    %1246 = vmatpush1.msra.mxu0 %v1175
    %1247 = vmatprep.subr.mxu0 0.0
    %1248 = vmatpush1.msra.mxu0 %v1174
    %1249 = vmatprep.subr.mxu0 0.0
    %1250 = vmatpush2.msra.mxu0 0.0
    %1251 = vmatprep.subr.mxu0 0.0
    %1252 = vmatpush2.msra.mxu0 0.0
    %1253 = vmatprep.subr.mxu0 0.0
    %1254 = vmatpush2.msra.mxu0 0.0
    %1255 = vmatprep.subr.mxu0 0.0
    %1256 = vmatpush2.msra.mxu0 0.0
    %1257 = vmatprep.subr.mxu0 0.0
    %1258 = vmatpush2.msra.mxu0 0.0
    %1259 = vmatprep.subr.mxu0 0.0
    %1260 = vmatpush2.msra.mxu0 0.0
    %1261 = vmatprep.subr.mxu0 0.0
    %1262 = vmatpush2.msra.mxu0 0.0
    %1263 = vmatprep.subr.mxu0 0.0
    %1264 = vmatpush2.msra.mxu0 0.0
    %1265 = vmatprep.subr.mxu0 0.0
    %1266 = vmatpush2.msra.mxu0 0.0
    %1267 = vmatprep.subr.mxu0 0.0
    %1268 = vmatpush2.msra.mxu0 0.0
    %1269 = vmatprep.subr.mxu0 0.0
    %1270 = vmatpush2.msra.mxu0 0.0
    %1271 = vmatprep.subr.mxu0 0.0
    %1272 = vmatpush2.msra.mxu0 0.0
    %1273 = vmatprep.subr.mxu0 0.0
    %1274 = vmatpush2.msra.mxu0 0.0
    %1275 = vmatprep.subr.mxu0 0.0
    %1276 = vmatpush2.msra.mxu0 0.0
    %1277 = vmatprep.subr.mxu0 0.0
    %1278 = vmatpush2.msra.mxu0 0.0
    %1279 = vmatprep.subr.mxu0 0.0
    %1280 = vmatpush2.msra.mxu0 0.0
    %1281 = vmatprep.mubr.f32.mxu0 0.0
    %1282 = vmatmul.mubr.f32.gmra.mxu0 %v1212
    %v1283 = vpop.f32.mrf.mxu0
    %v1284 = vadd.f32 0.0, %v1283
    %v1285 = vpop.f32.mrf.mxu0
    %1286 = vmatprep.mubr.f32.mxu0 0.0
    %1287 = vmatmul.mubr.f32.gmra.mxu0 %v1215
    %v1288 = vpop.f32.mrf.mxu0
    %v1289 = vadd.f32 0.0, %v1288
    %v1290 = vpop.f32.mrf.mxu0
    %1291 = vdwg.mxu0
    %1292 = vst.msk [vmem:[#allocation2] sm:$0xff] %vm1210, %v1284
    %1293 = vst.msk [vmem:[#allocation2 + $0x8] sm:$0xff] %vm1210, %v1289
    // Predicated region
    $region30: #{gridcell_encoder_forward.1} parent=1 // pred_check
      _
    $region31: #{gridcell_encoder_forward.1} parent=1 // pred_check_branch
      %1295 = sbr.rel (0) target = $region33
    $region32: #{gridcell_encoder_forward.1} parent=1 // pred_region
      %s1297 = ssub.s32 256, 256
      %1298 = vsyncadd [#allocation3], %s1297
      %s1299 = sshll.u32 [#allocation2], 4
      %s1300 = int_to_ptr.vmem [resolvable:$true] %s1299
      %1305 = dma.vmem_to_hbm [thread:$0]  %s1300, 256, %s7, [#allocation3], 128, 128, 8
    $region33: #{gridcell_encoder_forward.1} parent=1 // pred_fallthru
      _
    // Predicated region
    $region34: #{gridcell_encoder_forward.1} parent=1 // pred_check
      _
    $region35: #{gridcell_encoder_forward.1} parent=1 // pred_check_branch
      %1307 = sbr.rel (0) target = $region37
    $region36: #{gridcell_encoder_forward.1} parent=1 // pred_region
      %1308 = dma.done [#allocation3], 256
    $region37: #{gridcell_encoder_forward.1} parent=1 // pred_fallthru
      _
    %1309 = vsyncpa [#allocation3], 1

</llo_original>
